<compile_context>
chip_gen: v5e
topology: v5e:2x2
jax: 0.10.0
libtpu: 0.0.40
codegen_flags: <defaults>
</compile_context>

<pallas_src>
import functools

import jax
import jax.numpy as jnp
from jax.experimental import pallas as pl
from jax.experimental.pallas import tpu as pltpu

_LANE = 128


def _cdiv(a, b):
    return -(-a // b)


def _round_up(n, m):
    return _cdiv(n, m) * m


def _vmem_budget_and_limit():
    """(tile-sizing budget, scoped-VMEM limit) derived from physical VMEM."""
    cap = 64 * 1024 * 1024  # conservative fallback (v7x physical per-TC VMEM)
    try:
        info = pltpu.get_tpu_info()
        cap = int(getattr(info, "vmem_capacity_bytes", cap)) or cap
    except Exception:
        pass
    return (3 * cap) // 8, (3 * cap) // 4


def _pick_tile(max_cols, hw):
    """Largest lane-multiple HW tile <= max_cols; full extent when hw <= 128."""
    if hw <= _LANE:
        return hw                                  # block dim == array dim
    return max(_LANE, min(max_cols, hw) // _LANE * _LANE)


# ---------------------------------------------------------------------------
# Fast path: fused mean -> 1x1 conv -> sigmoid -> broadcast multiply.
# ---------------------------------------------------------------------------
def _arm_fused_kernel(x_ref, wt_ref, b_ref, o_ref):
    # x_ref : (bt, C_in, HW)   bt whole images per grid step
    # wt_ref: (C_in, C_out)    transposed 1x1-conv weight
    # b_ref : (1, C_out)       conv bias
    # o_ref : (bt, C_out, HW)
    x = x_ref[...]
    hw = x.shape[-1]
    mean = jnp.sum(x.astype(jnp.float32), axis=-1) * (1.0 / hw)      # (bt, C_in)
    att = jnp.dot(mean, wt_ref[...], preferred_element_type=jnp.float32)
    att = jax.nn.sigmoid(att + b_ref[...].astype(jnp.float32))       # (bt, C_out)
    o_ref[...] = (x * att.astype(x.dtype)[:, :, None]).astype(o_ref.dtype)


# ---------------------------------------------------------------------------
# Two-pass path, pass 1: per-image channel sums (f32, sublane-layout accum).
# ---------------------------------------------------------------------------
def _arm_sum_kernel(x_ref, s_ref, *, hw, tile, tiles_per_split, mask):
    # x_ref : (1, C, tile) one lane-dense HW tile
    # s_ref : (1, C, 1)    f32 accumulator, revisited along the last grid axis
    ti = pl.program_id(2)

    @pl.when(ti == 0)
    def _():
        s_ref[...] = jnp.zeros_like(s_ref)

    x = x_ref[...].astype(jnp.float32)
    if mask:
        # Logical column index of each lane; zero out columns >= HW (covers both
        # the ragged last tile and any clamped/duplicated tile past the end).
        col0 = (pl.program_id(1) * tiles_per_split + ti) * tile
        col = jax.lax.broadcasted_iota(jnp.int32, x.shape, 2) + col0
        x = jnp.where(col < hw, x, 0.0)
    s_ref[...] += jnp.sum(x, axis=-1, keepdims=True)


# ---------------------------------------------------------------------------
# Two-pass path, pass 2: lane-dense broadcast multiply (pure VPU work).
# ---------------------------------------------------------------------------
def _arm_scale_kernel(x_ref, a_ref, o_ref):
    # x_ref : (1, C, tile); a_ref : (1, C, 1) f32; o_ref : (1, C, tile)
    x = x_ref[...]
    o_ref[...] = (x * a_ref[...].astype(x.dtype)).astype(o_ref.dtype)


def attention_refinement_module(x, w, b, *, force_two_pass=False):
    """x: (B, C, H, W); w: (C_out, C_in) 1x1-conv weight; b: (C_out,) bias."""
    B, C_in, H, W = x.shape
    C_out = w.shape[0]
    assert C_in == C_out, "in_channels and out_channels should all be equal"
    HW = H * W
    dsize = jnp.dtype(x.dtype).itemsize
    x_flat = x.reshape(B, C_in, HW)
    budget, vmem_limit = _vmem_budget_and_limit()

    # ------------------------------------------------------------------
    # Fast path: whole (bt, C, HW) planes per step (single read + write of x).
    # Cost per step ~ 2x in + 2x out (double-buffered) + product temp, plus the
    # f32 upcast temp for sub-32-bit inputs.
    # ------------------------------------------------------------------
    per_image = C_in * HW * dsize
    factor = 5 + ((4 // dsize) if dsize < 4 else 0)
    bt = 0
    if not force_two_pass:
        max_bt = B // 2 if B >= 2 else 1   # >=2 grid steps when B >= 2 (megacore)
        for cand in range(max_bt, 0, -1):
            if B % cand == 0 and factor * cand * per_image <= budget:
                bt = cand
                break

    if bt > 0:
        wt = jnp.transpose(w)                       # (C_in, C_out)
        b2 = b.reshape(1, C_out)
        out = pl.pallas_call(
            _arm_fused_kernel,
            out_shape=jax.ShapeDtypeStruct((B, C_out, HW), x.dtype),
            grid_spec=pl.GridSpec(
                grid=(B // bt,),
                in_specs=[
                    pl.BlockSpec((bt, C_in, HW), lambda i: (i, 0, 0)),
                    pl.BlockSpec((C_in, C_out), lambda i: (0, 0)),
                    pl.BlockSpec((1, C_out), lambda i: (0, 0)),
                ],
                out_specs=pl.BlockSpec((bt, C_out, HW), lambda i: (i, 0, 0)),
            ),
            compiler_params=pltpu.CompilerParams(
                dimension_semantics=("parallel",),
                vmem_limit_bytes=vmem_limit),
        )(x_flat, wt, b2)
        return out.reshape(B, C_out, H, W)

    # ------------------------------------------------------------------
    # Two-pass path (large feature maps). No padding; ragged tiles are masked
    # (pass 1) or clipped on store (pass 2).
    # ------------------------------------------------------------------
    # Pass 1 streams only x: budget over 2x dbuf input + f32/where temps.
    tile1 = _pick_tile(budget // max(1, C_in * (2 * dsize + 8)), HW)
    n_split = 1
    if B == 1 and HW >= 2 * _LANE:
        # Split HW into two parallel chunks so both v7x TensorCores reduce.
        n_split = 2
        tile1 = min(tile1, _round_up(_cdiv(HW, 2), _LANE))
    nt1 = _cdiv(HW, tile1)
    tps = _cdiv(nt1, n_split)                       # tiles per split
    mask = (n_split * tps * tile1) != HW

    sum_kernel = functools.partial(
        _arm_sum_kernel, hw=HW, tile=tile1, tiles_per_split=tps, mask=mask)

    def x_map1(bi, pi, ti, _tps=tps, _nt=nt1):
        # Clamp so a block start never lands past the array end; any clamped
        # (duplicated) tile is zeroed by the in-kernel mask.
        return (bi, 0, jnp.minimum(pi * _tps + ti, _nt - 1))

    def s_map1(bi, pi, ti, _ns=n_split):
        return (bi * _ns + pi, 0, 0)

    sums = pl.pallas_call(
        sum_kernel,
        out_shape=jax.ShapeDtypeStruct((B * n_split, C_in, 1), jnp.float32),
        grid_spec=pl.GridSpec(
            grid=(B, n_split, tps),
            in_specs=[pl.BlockSpec((1, C_in, tile1), x_map1)],
            out_specs=pl.BlockSpec((1, C_in, 1), s_map1),
        ),
        compiler_params=pltpu.CompilerParams(
            dimension_semantics=("parallel", "parallel", "arbitrary"),
            vmem_limit_bytes=vmem_limit),
    )(x_flat)

    # Tiny epilogue (O(B*C^2)) left to XLA: combine partial sums, 1x1 conv, sigmoid.
    means = jnp.sum(sums.reshape(B, n_split, C_in), axis=1) * (1.0 / HW)  # (B, C)
    att = jax.nn.sigmoid(means @ w.astype(jnp.float32).T
                         + b.astype(jnp.float32)[None, :])                # (B, C)
    att3 = att[:, :, None]                                                # (B, C, 1)

    # Pass 2 streams x in + out: budget over 2x in + 2x out dbuf + product temp.
    tile2 = _pick_tile(budget // max(1, C_in * 5 * dsize), HW)
    nt2 = _cdiv(HW, tile2)
    out = pl.pallas_call(
        _arm_scale_kernel,
        out_shape=jax.ShapeDtypeStruct((B, C_out, HW), x.dtype),
        grid_spec=pl.GridSpec(
            grid=(B, nt2),
            in_specs=[
                pl.BlockSpec((1, C_in, tile2), lambda bi, ti: (bi, 0, ti)),
                pl.BlockSpec((1, C_out, 1), lambda bi, ti: (bi, 0, 0)),
            ],
            out_specs=pl.BlockSpec((1, C_out, tile2), lambda bi, ti: (bi, 0, ti)),
        ),
        compiler_params=pltpu.CompilerParams(
            dimension_semantics=("parallel", "parallel"),
            vmem_limit_bytes=vmem_limit),
    )(x_flat, att3)
    return out.reshape(B, C_out, H, W)


def _reference(x, w, b):
    m = jnp.mean(x, axis=(2, 3), keepdims=True)                       # (B, C, 1, 1)
    a = jnp.einsum('oc,bcij->boij', w, m) + b[None, :, None, None]
    a = jax.nn.sigmoid(a)
    return x * a


if __name__ == "__main__":
    key = jax.random.PRNGKey(0)
    k_x, k_w, k_b, k_x2, k_x3 = jax.random.split(key, 5)

    # Primary test config (fast fused path, grid of 2).
    B, C, H, W = 2, 4, 16, 16
    x = jax.random.normal(k_x, (B, C, H, W), dtype=jnp.float32)
    w = jax.random.normal(k_w, (C, C), dtype=jnp.float32) * 0.1
    b = jax.random.normal(k_b, (C,), dtype=jnp.float32) * 0.1

    y = jax.block_until_ready(attention_refinement_module(x, w, b))
    y_ref = _reference(x, w, b)
    assert y.shape == (B, C, H, W)
    assert jnp.allclose(y, y_ref, atol=1e-5, rtol=1e-5)

    # Same inputs through the tiled two-pass path.
    y2 = jax.block_until_ready(
        attention_refinement_module(x, w, b, force_two_pass=True))
    assert jnp.allclose(y2, y_ref, atol=1e-5, rtol=1e-5)

    # Two-pass path, B=1 (exercises the HW split + ragged-tile masking; HW=324
    # is not a multiple of 128, pass-2 last block is partial).
    B3, C3, H3, W3 = 1, 8, 18, 18
    x3 = jax.random.normal(k_x2, (B3, C3, H3, W3), dtype=jnp.float32)
    w3 = jax.random.normal(k_w, (C3, C3), dtype=jnp.float32) * 0.1
    b3 = jax.random.normal(k_b, (C3,), dtype=jnp.float32) * 0.1
    y3 = jax.block_until_ready(
        attention_refinement_module(x3, w3, b3, force_two_pass=True))
    assert jnp.allclose(y3, _reference(x3, w3, b3), atol=1e-5, rtol=1e-5)

    # Two-pass path with HW < 128 (full-extent lane tile, no masking needed).
    B4, C4, H4, W4 = 1, 8, 10, 10
    x4 = jax.random.normal(k_x3, (B4, C4, H4, W4), dtype=jnp.float32)
    y4 = jax.block_until_ready(
        attention_refinement_module(x4, w3, b3, force_two_pass=True))
    assert jnp.allclose(y4, _reference(x4, w3, b3), atol=1e-5, rtol=1e-5)

    print("KERNEL_OK")
</pallas_src>

<mosaic_0001>
module attributes {stable_mosaic.version = 11 : i64} {
  func.func @_arm_fused_kernel(%arg0: i32, %arg1: memref<1x4x256xf32, #tpu.memory_space<vmem>>, %arg2: memref<4x4xf32, #tpu.memory_space<vmem>>, %arg3: memref<1x4xf32, #tpu.memory_space<vmem>>, %arg4: memref<1x4x256xf32, #tpu.memory_space<vmem>>) attributes {dimension_semantics = [#tpu.dimension_semantics<parallel>], iteration_bounds = array<i64: 2>, scalar_prefetch = 0 : i64, scratch_operands = 0 : i64, tpu.core_type = #tpu.core_type<tc>, window_params = [{transform_indices = @transform_0, window_bounds = array<i64: 1, 4, 256>}, {pipeline_mode = #tpu.pipeline_mode<synchronous>, transform_indices = @transform_1, window_bounds = array<i64: 4, 4>}, {pipeline_mode = #tpu.pipeline_mode<synchronous>, transform_indices = @transform_2, window_bounds = array<i64: 1, 4>}, {transform_indices = @transform_3, window_bounds = array<i64: 1, 4, 256>}]} {
    %c0 = arith.constant 0 : index
    %c0_0 = arith.constant 0 : index
    %c0_1 = arith.constant 0 : index
    %0 = vector.load %arg1[%c0, %c0_0, %c0_1] : memref<1x4x256xf32, #tpu.memory_space<vmem>>, vector<1x4x256xf32>
    %cst = arith.constant dense<0.000000e+00> : vector<1x4xf32>
    %1 = vector.multi_reduction <add>, %0, %cst [2] : vector<1x4x256xf32> to vector<1x4xf32>
    %cst_2 = arith.constant 3.906250e-03 : f32
    %2 = vector.broadcast %cst_2 : f32 to vector<1x4xf32>
    %3 = arith.mulf %1, %2 : vector<1x4xf32>
    %c0_3 = arith.constant 0 : index
    %c0_4 = arith.constant 0 : index
    %4 = vector.load %arg2[%c0_3, %c0_4] : memref<4x4xf32, #tpu.memory_space<vmem>>, vector<4x4xf32>
    %cst_5 = arith.constant dense<0.000000e+00> : vector<1x4xf32>
    %5 = tpu.matmul %3, %4, %cst_5 {dimension_numbers = #tpu.dot_dimension_numbers<[1], [0], [0], [1], [0, 0, 1, 1], [], []>} : vector<1x4xf32>, vector<4x4xf32>, vector<1x4xf32> -> vector<1x4xf32>
    %c0_6 = arith.constant 0 : index
    %c0_7 = arith.constant 0 : index
    %6 = vector.load %arg3[%c0_6, %c0_7] : memref<1x4xf32, #tpu.memory_space<vmem>>, vector<1x4xf32>
    %7 = arith.addf %5, %6 : vector<1x4xf32>
    %8 = arith.negf %7 : vector<1x4xf32>
    %9 = math.exp %8 : vector<1x4xf32>
    %cst_8 = arith.constant 1.000000e+00 : f32
    %10 = vector.broadcast %cst_8 : f32 to vector<1x4xf32>
    %11 = arith.addf %10, %9 : vector<1x4xf32>
    %12 = arith.divf %10, %11 : vector<1x4xf32>
    %13 = vector.shape_cast %12 : vector<1x4xf32> to vector<1x4x1xf32>
    %14 = vector.broadcast %13 : vector<1x4x1xf32> to vector<1x4x256xf32>
    %15 = arith.mulf %0, %14 : vector<1x4x256xf32>
    %c0_9 = arith.constant 0 : index
    %c0_10 = arith.constant 0 : index
    %c0_11 = arith.constant 0 : index
    %16 = vector.load %arg4[%c0_9, %c0_10, %c0_11] : memref<1x4x256xf32, #tpu.memory_space<vmem>>, vector<1x4x256xf32>
    tpu.vector_store %arg4[%c0_9, %c0_10, %c0_11], %15 {strides = array<i32>} : memref<1x4x256xf32, #tpu.memory_space<vmem>>, vector<1x4x256xf32>,
    return
  }
  func.func @transform_0(%arg0: i32) -> (i32, i32, i32) {
    %c0_i32 = arith.constant 0 : i32
    %c0_i32_0 = arith.constant 0 : i32
    %c0_i32_1 = arith.constant 0 : i32
    return %arg0, %c0_i32, %c0_i32_0 : i32, i32, i32
  }
  func.func @transform_1(%arg0: i32) -> (i32, i32) {
    %c0_i32 = arith.constant 0 : i32
    %c0_i32_0 = arith.constant 0 : i32
    %c0_i32_1 = arith.constant 0 : i32
    return %c0_i32, %c0_i32_0 : i32, i32
  }
  func.func @transform_2(%arg0: i32) -> (i32, i32) {
    %c0_i32 = arith.constant 0 : i32
    %c0_i32_0 = arith.constant 0 : i32
    %c0_i32_1 = arith.constant 0 : i32
    return %c0_i32, %c0_i32_0 : i32, i32
  }
  func.func @transform_3(%arg0: i32) -> (i32, i32, i32) {
    %c0_i32 = arith.constant 0 : i32
    %c0_i32_0 = arith.constant 0 : i32
    %c0_i32_1 = arith.constant 0 : i32
    return %arg0, %c0_i32, %c0_i32_0 : i32, i32, i32
  }
}

</mosaic_0001>

<llo_original>
// kernel: tpu_custom_call.1
$region0: #{tpu_custom_call.1}
  #allocation0 [shape = 'u32[]', space=smem, size = 0x4, offset = 0x4, fixed_abs, tag = 'smem constant byte address 0x4 - core index']
  #allocation1 [shape = 'u32[72,128]{1,0:T(1,128)}', space=vmem, size = 0x9000, scoped, tag = 'internal scratch']
  %s0 = inlined_call_operand.hbm [shape: f32[2,4,256], index: 0, kind: input, shape index: {}]
  %s1 = inlined_call_operand.hbm [shape: f32[4,4], index: 1, kind: input, shape index: {}]
  %s2 = inlined_call_operand.vmem [shape: f32[1,4], index: 2, kind: input, shape index: {}]
  %s3 = inlined_call_operand.hbm [shape: f32[2,4,256], index: 3, kind: output, shape index: {}]
  %s4 = sld [smem:[#allocation0]]
  $region53: #{tpu_custom_call.1} parent=0
    _
  %s6 = ssub.s32 1, %s4
  %s7 = scalar_select 0, %s6, %s4
  $region1: #{tpu_custom_call.1} parent=0
    #allocation2 [shape = 'u8[8192]{0}', space=vmem, size = 0x2000, scoped, tag = 'input window, operand 0']
    #allocation3 [shape = 's32[2]{0}', space=sflag, size = 0x8, scoped, tag = 'scoped memory for tpu_custom_call.1']
    #allocation4 [shape = 's32[2]{0}', space=sflag, size = 0x8, scoped, tag = 'scoped memory for tpu_custom_call.1']
    #allocation5 [shape = 'u8[2048]{0}', space=vmem, size = 0x800, scoped, tag = 'input window, operand 1, single buffered']
    #allocation6 [shape = 's32[1]{0}', space=sflag, size = 0x4, scoped, tag = 'scoped memory for tpu_custom_call.1']
    #allocation7 [shape = 'u8[8192]{0}', space=vmem, size = 0x2000, scoped, tag = 'output window, operand 0']
    %8 = vsyncpa [#allocation3], 0
    %s9 = scalar_lea.sflag [#allocation3], 1
    %10 = vsyncpa %s9, 0
    %11 = vsyncpa [#allocation6], 0
    %12 = vsyncpa [#allocation4], 0
    %s13 = scalar_lea.sflag [#allocation4], 1
    %14 = vsyncpa %s13, 0
    loop: start=0, step=1, limit=4
    $region2: #{tpu_custom_call.1} parent=1 // loop_pre_header
      _
    $region3: #{tpu_custom_call.1} parent=1 // loop_header
      %s16 = sphi 0, %s20
      %p17 = scmp.ge.s32.totalorder %s16, 4
      %s26 = sphi 0, %s28
      %s29 = sphi 0, %s26
      %s30 = sphi 0, %s29
      %s46 = sphi 0, %s30
      %s50 = sphi 0, %s50
      %s52 = sphi 0, %s50
      %s53 = sphi 0, %s52
      %s67 = sphi 0, %s53
      %s71 = sphi 0, %s71
      %s73 = sphi 0, %s71
      %s74 = sphi 0, %s73
      %s88 = sphi 0, %s74
      %s94 = sphi 0, %s96
      %s97 = sphi 0, %s94
      %s98 = sphi 0, %s97
      %s114 = sphi 0, %s98
    $region4: #{tpu_custom_call.1} parent=1 // loop_header_branch
      %19 = sbr.rel (%p17) target = $region8
    $region5: #{tpu_custom_call.1} parent=1 // loop_body
      %s21 = ssub.s32 %s16, 1
      %s22 = ssub.s32 %s16, 2
      %s23 = sadd.s32 %s16, 1
      %s24 = ssub.s32 %s16, %s23
      %p25 = scmp.eq.s32.totalorder %s24, 0
      %s27 = sadd.s32 %s26, 1
      %s28 = scalar_select %p25, %s26, %s27
      %p31 = pneg %p25
      %p32 = scmp.eq.s32.totalorder %s16, 1
      %p33 = por %p31, %p32
      %p34 = scmp.ne.s32.totalorder %s26, %s29
      %p35 = scmp.eq.s32.totalorder %s16, 0
      %p36 = por %p34, %p35
      %p37 = scmp.ne.s32.totalorder %s26, %s29
      %p38 = scmp.eq.s32.totalorder %s21, 1
      %p39 = por %p37, %p38
      %p40 = scmp.ne.s32.totalorder %s29, %s30
      %p41 = scmp.eq.s32.totalorder %s21, 0
      %p42 = por %p40, %p41
      %p43 = scmp.ne.s32.totalorder %s29, %s30
      %p44 = scmp.eq.s32.totalorder %s22, 1
      %p45 = por %p43, %p44
      %p47 = scmp.ne.s32.totalorder %s30, %s46
      %p48 = scmp.eq.s32.totalorder %s22, 0
      %p49 = por %p47, %p48
      %s51 = sadd.s32 %s50, 1
      %p54 = scmp.eq.s32.totalorder %s16, 1
      %p55 = scmp.ne.s32.totalorder %s50, %s52
      %p56 = scmp.eq.s32.totalorder %s16, 0
      %p57 = por %p55, %p56
      %p58 = scmp.ne.s32.totalorder %s50, %s52
      %p59 = scmp.eq.s32.totalorder %s21, 1
      %p60 = por %p58, %p59
      %p61 = scmp.ne.s32.totalorder %s52, %s53
      %p62 = scmp.eq.s32.totalorder %s21, 0
      %p63 = por %p61, %p62
      %p64 = scmp.ne.s32.totalorder %s52, %s53
      %p65 = scmp.eq.s32.totalorder %s22, 1
      %p66 = por %p64, %p65
      %p68 = scmp.ne.s32.totalorder %s53, %s67
      %p69 = scmp.eq.s32.totalorder %s22, 0
      %p70 = por %p68, %p69
      %s72 = sadd.s32 %s71, 1
      %p75 = scmp.eq.s32.totalorder %s16, 1
      %p76 = scmp.ne.s32.totalorder %s71, %s73
      %p77 = scmp.eq.s32.totalorder %s16, 0
      %p78 = por %p76, %p77
      %p79 = scmp.ne.s32.totalorder %s71, %s73
      %p80 = scmp.eq.s32.totalorder %s21, 1
      %p81 = por %p79, %p80
      %p82 = scmp.ne.s32.totalorder %s73, %s74
      %p83 = scmp.eq.s32.totalorder %s21, 0
      %p84 = por %p82, %p83
      %p85 = scmp.ne.s32.totalorder %s73, %s74
      %p86 = scmp.eq.s32.totalorder %s22, 1
      %p87 = por %p85, %p86
      %p89 = scmp.ne.s32.totalorder %s74, %s88
      %p90 = scmp.eq.s32.totalorder %s22, 0
      %p91 = por %p89, %p90
      %s92 = ssub.s32 %s16, %s23
      %p93 = scmp.eq.s32.totalorder %s92, 0
      %s95 = sadd.s32 %s94, 1
      %s96 = scalar_select %p93, %s94, %s95
      %p99 = pneg %p93
      %p100 = scmp.eq.s32.totalorder %s16, 1
      %p101 = por %p99, %p100
      %p102 = scmp.ne.s32.totalorder %s94, %s97
      %p103 = scmp.eq.s32.totalorder %s16, 0
      %p104 = por %p102, %p103
      %p105 = scmp.ne.s32.totalorder %s94, %s97
      %p106 = scmp.eq.s32.totalorder %s21, 1
      %p107 = por %p105, %p106
      %p108 = scmp.ne.s32.totalorder %s97, %s98
      %p109 = scmp.eq.s32.totalorder %s21, 0
      %p110 = por %p108, %p109
      %p111 = scmp.ne.s32.totalorder %s97, %s98
      %p112 = scmp.eq.s32.totalorder %s22, 1
      %p113 = por %p111, %p112
      %p115 = scmp.ne.s32.totalorder %s98, %s114
      %p116 = scmp.eq.s32.totalorder %s22, 0
      %p117 = por %p115, %p116
      %p118 = scmp.le.s32.totalorder 1, %s16
      %p119 = scmp.lt.s32.totalorder %s16, 3
      %p120 = pnand %p118, %p119
      %p121 = pneg %p120
      // Predicated region
      $region9: #{tpu_custom_call.1} parent=5 // pred_check
        _
      $region10: #{tpu_custom_call.1} parent=5 // pred_check_branch
        %123 = sbr.rel (%p120) target = $region12
      $region11: #{tpu_custom_call.1} parent=5 // pred_region
        %s124 = ssub.s32 %s16, 1
        // Predicated region
        $region13: #{tpu_custom_call.1} parent=11 // pred_check
          %p125 = pneg %p63
        $region14: #{tpu_custom_call.1} parent=11 // pred_check_branch
          %127 = sbr.rel (%p125) target = $region16
        $region15: #{tpu_custom_call.1} parent=11 // pred_region
          %129 = vsyncadd [#allocation6], 0
          %s131 = sshll.u32 %s1, 4
          %s132 = int_to_ptr.hbm [resolvable:$true] %s131
          %s133 = sshll.u32 [#allocation5], 4
          %s134 = int_to_ptr.vmem [resolvable:$true] %s133
          %136 = dma.hbm_to_vmem [thread:$0]  %s132, 64, %s134, [#allocation6]
        $region16: #{tpu_custom_call.1} parent=11 // pred_fallthru
          _
        // Predicated region
        $region17: #{tpu_custom_call.1} parent=11 // pred_check
          %p137 = pneg %p84
        $region18: #{tpu_custom_call.1} parent=11 // pred_check_branch
          %139 = sbr.rel (%p137) target = $region20
        $region19: #{tpu_custom_call.1} parent=11 // pred_region
          _
        $region20: #{tpu_custom_call.1} parent=11 // pred_fallthru
          _
      $region12: #{tpu_custom_call.1} parent=5 // pred_fallthru
        _
      %p140 = scmp.lt.s32.totalorder %s16, 2
      // Predicated region
      $region21: #{tpu_custom_call.1} parent=5 // pred_check
        %p141 = pneg %p140
      $region22: #{tpu_custom_call.1} parent=5 // pred_check_branch
        %143 = sbr.rel (%p141) target = $region24
      $region23: #{tpu_custom_call.1} parent=5 // pred_region
        // Predicated region
        $region25: #{tpu_custom_call.1} parent=23 // pred_check
          %p144 = pneg %p36
        $region26: #{tpu_custom_call.1} parent=23 // pred_check_branch
          %146 = sbr.rel (%p144) target = $region28
        $region27: #{tpu_custom_call.1} parent=23 // pred_region
          %s147 = sand.u32 %s26, 1
          %s148 = scalar_lea.sflag [#allocation3], %s147
          %s149 = sand.u32 %s26, 1
          %s150 = smul.addr %s149, 8
          %s151 = scalar_lea.vmem [#allocation2], %s150
          %153 = vsyncadd %s148, 0
          %s154 = smul.addr %s16, 2
          %s155 = smul.addr %s154, 4
          %s156 = scalar_lea.hbm %s0, %s155
          %s158 = sshll.u32 %s156, 4
          %s159 = int_to_ptr.hbm [resolvable:$true] %s158
          %s160 = sshll.u32 %s151, 4
          %s161 = int_to_ptr.vmem [resolvable:$true] %s160
          %163 = dma.hbm_to_vmem [thread:$0]  %s159, 128, %s161, %s148
        $region28: #{tpu_custom_call.1} parent=23 // pred_fallthru
          _
      $region24: #{tpu_custom_call.1} parent=5 // pred_fallthru
        _
      %p164 = scmp.le.s32.totalorder 1, %s16
      %p165 = scmp.lt.s32.totalorder %s16, 3
      %p166 = pnand %p164, %p165
      %p167 = pneg %p166
      // Predicated region
      $region29: #{tpu_custom_call.1} parent=5 // pred_check
        _
      $region30: #{tpu_custom_call.1} parent=5 // pred_check_branch
        %169 = sbr.rel (%p166) target = $region32
      $region31: #{tpu_custom_call.1} parent=5 // pred_region
        %s170 = ssub.s32 %s16, 1
        %s171 = sand.u32 %s29, 1
        %s172 = scalar_lea.sflag [#allocation3], %s171
        %s173 = sand.u32 %s29, 1
        %s174 = smul.addr %s173, 8
        %s175 = scalar_lea.vmem [#allocation2], %s174
        // Predicated region
        $region33: #{tpu_custom_call.1} parent=31 // pred_check
          %p176 = pneg %p42
        $region34: #{tpu_custom_call.1} parent=31 // pred_check_branch
          %178 = sbr.rel (%p176) target = $region36
        $region35: #{tpu_custom_call.1} parent=31 // pred_region
          %180 = dma.done %s172, 128
        $region36: #{tpu_custom_call.1} parent=31 // pred_fallthru
          _
        // Predicated region
        $region37: #{tpu_custom_call.1} parent=31 // pred_check
          %p181 = pneg %p63
        $region38: #{tpu_custom_call.1} parent=31 // pred_check_branch
          %183 = sbr.rel (%p181) target = $region40
        $region39: #{tpu_custom_call.1} parent=31 // pred_region
          %185 = dma.done [#allocation6], 64
        $region40: #{tpu_custom_call.1} parent=31 // pred_fallthru
          _
        %s186 = sand.u32 %s29, 1
        %s187 = scalar_lea.sflag [#allocation3], %s186
        %s188 = sand.u32 %s29, 1
        %s189 = smul.addr %s188, 8
        %s190 = scalar_lea.vmem [#allocation2], %s189
        %p191 = pneg %p42
        %p192 = pneg %p39
        %p193 = pneg %p63
        %p194 = pneg %p60
        %p195 = pneg %p84
        %p196 = pneg %p81
        %p197 = pneg %p110
        %p198 = pneg %p107
        %s199 = sand.u32 %s97, 1
        %s200 = scalar_lea.sflag [#allocation4], %s199
        %s201 = sand.u32 %s97, 1
        %s202 = smul.addr %s201, 8
        %s203 = scalar_lea.vmem [#allocation7], %s202
        %v204 = vld [vmem:[%s175] sm:$0xff]
        %206 = vst [vmem:[#allocation1] ss:$2 sm:$0xff] %v204
        %v207 = vld.sshfl [vmem:[#allocation1] sm:$0xff pattern:$0x75316420]
        %v208 = vld.sshfl [vmem:[#allocation1 + $0x8] sm:$0xff pattern:$0x75316420]
        %vm211 = vcmask 1043456
        %v212 = vsel %vm211, %v207, 0.0
        %v213 = vsel %vm211, %v208, 0.0
        %v214 = vadd.f32 %v212, %v213
        %215 = vadd.xlane.f32.xlu0 %v214
        %v216 = vpop.xlane.xlu0 %215
        %v217 = vmul.f32 %v216, 0.00390625
        %v218 = vld [vmem:[#allocation5] sm:$0xf]
        %v219 = vld [vmem:[%s2] sm:$0x1]
        %v221 = vlaneseq
        %v222 = vand.u32 %v221, 127
        %v223 = vperm.slane %v217, %v222
        %vm224 = vcmask 31744
        %v225 = vsel %vm224, %v223, 0
        %v228 = vsel %vm211, %v218, 0
        %230 = vmatpush.msra.mxu0 0.0
        %231 = vmatpush.msra.mxu0 0.0
        %232 = vmatpush.msra.mxu0 0.0
        %233 = vmatpush.msra.mxu0 0.0
        %234 = vmatpush.msra.mxu0 0.0
        %235 = vmatpush.msra.mxu0 0.0
        %236 = vmatpush.msra.mxu0 0.0
        %237 = vmatpush.msra.mxu0 0.0
        %238 = vmatpush.msra.mxu0 0.0
        %239 = vmatpush.msra.mxu0 0.0
        %240 = vmatpush.msra.mxu0 0.0
        %241 = vmatpush.msra.mxu0 0.0
        %242 = vmatpush.msra.mxu0 0.0
        %243 = vmatpush.msra.mxu0 0.0
        %244 = vmatpush.msra.mxu0 0.0
        %245 = vmatpush.msra.mxu0 %v228
        %246 = vmatmul.f32.gmra.mxu0 %v225
        %v247 = vpop.f32.mrf.mxu0
        %v248 = vadd.f32 %v219, %v247
        %249 = vdwg.mxu0
        %v250 = vxor.u32 %v248, 2147483648
        %v251 = vmul.f32 %v250, 1.442695
        %v252 = vpow.pop %v251
        %v253 = vadd.f32 %v252, 1.0
        %v254 = vrcp.pop %v253
        %v255 = vmul.f32 %v253, %v254
        %v256 = vsub.f32 1.0, %v255
        %v257 = vmul.f32 %v254, %v256
        %v258 = vadd.f32 %v254, %v257
        %vm259 = vweird.f32 %v253
        %vm260 = vweird.f32 %v254
        %vm261 = vmor %vm259, %vm260
        %v262 = vsel %vm261, %v254, %v258
        %v263 = vand.u32 2147483647, %v253
        %vm264 = vcmp.eq.f32.partialorder %v263, 8.507059e+37
        %v265 = vand.u32 %v253, 2147483648
        %v266 = vor.u32 1.1754944e-38, %v265
        %v267 = vsel %vm264, %v266, %v262
        %v268 = vmul.f32 1.0, %v267
        %v269 = vperm.slane %v268, 0
        %v270 = vlaneseq
        %v271 = vshrl.u32 %v270, 7
        %273 = vset.pattern.permute.xlu0 %v271
        %274 = vperm.xlu0 %273, %v269
        %v275 = vpop.permute.xlu0 %274
        %v278 = vunpack.c.l.s4 839922192
        %v279 = vunpack.c.0.s8 %v278
        %v280 = vperm.slane %v275, %v279
        %v282 = vmul.f32 %v204, %v280
        %283 = vst [vmem:[%s203] sm:$0xff] %v282
        %s284 = sand.u32 %s97, 1
        %s285 = scalar_lea.sflag [#allocation4], %s284
        %s286 = sand.u32 %s97, 1
        %s287 = smul.addr %s286, 8
        %s288 = scalar_lea.vmem [#allocation7], %s287
        // Predicated region
        $region41: #{tpu_custom_call.1} parent=31 // pred_check
          %p289 = pneg %p107
        $region42: #{tpu_custom_call.1} parent=31 // pred_check_branch
          %291 = sbr.rel (%p289) target = $region44
        $region43: #{tpu_custom_call.1} parent=31 // pred_region
          %293 = vsyncadd %s285, 0
          %s294 = smul.addr %s21, 2
          %s295 = smul.addr %s294, 4
          %s296 = scalar_lea.hbm %s3, %s295
          %s298 = sshll.u32 %s288, 4
          %s299 = int_to_ptr.vmem [resolvable:$true] %s298
          %s300 = sshll.u32 %s296, 4
          %s301 = int_to_ptr.hbm [resolvable:$true] %s300
          %303 = dma.vmem_to_hbm [thread:$0]  %s299, 128, %s301, %s285
        $region44: #{tpu_custom_call.1} parent=31 // pred_fallthru
          _
      $region32: #{tpu_custom_call.1} parent=5 // pred_fallthru
        _
      %p304 = scmp.le.s32.totalorder 2, %s16
      // Predicated region
      $region45: #{tpu_custom_call.1} parent=5 // pred_check
        %p305 = pneg %p304
      $region46: #{tpu_custom_call.1} parent=5 // pred_check_branch
        %307 = sbr.rel (%p305) target = $region48
      $region47: #{tpu_custom_call.1} parent=5 // pred_region
        %s308 = ssub.s32 %s16, 2
        // Predicated region
        $region49: #{tpu_custom_call.1} parent=47 // pred_check
          %p309 = pneg %p113
        $region50: #{tpu_custom_call.1} parent=47 // pred_check_branch
          %311 = sbr.rel (%p309) target = $region52
        $region51: #{tpu_custom_call.1} parent=47 // pred_region
          %s312 = sand.u32 %s98, 1
          %s313 = scalar_lea.sflag [#allocation4], %s312
          %s314 = sand.u32 %s98, 1
          %s315 = smul.addr %s314, 8
          %s316 = scalar_lea.vmem [#allocation7], %s315
          %318 = dma.done %s313, 128
        $region52: #{tpu_custom_call.1} parent=47 // pred_fallthru
          _
      $region48: #{tpu_custom_call.1} parent=5 // pred_fallthru
        _
    $region6: #{tpu_custom_call.1} parent=1 // loop_footer
      %s20 = sadd.s32 1, %s16
    $region7: #{tpu_custom_call.1} parent=1 // loop_footer_branch
      %15 = sbr.rel target = $region3
    $region8: #{tpu_custom_call.1} parent=1 // loop_exit
      _
    %319 = vsyncpa [#allocation3], 1
    %s320 = scalar_lea.sflag [#allocation3], 1
    %321 = vsyncpa %s320, 1
    %322 = vsyncpa [#allocation6], 1
    %323 = vsyncpa [#allocation4], 1
    %s324 = scalar_lea.sflag [#allocation4], 1
    %325 = vsyncpa %s324, 1

</llo_original>
